<compile_context>
chip_gen: v5e
topology: v5e:2x2
jax: 0.10.0
libtpu: 0.0.40
codegen_flags: <defaults>
</compile_context>

<pallas_src>
import jax
import jax.numpy as jnp
from jax.experimental import pallas as pl
from jax.experimental.pallas import tpu as pltpu

STATE_DIM = 20
HIDDEN_DIM = 128
ACTION_DIM = 1000

K_PAD = 32      # state_dim padded to a multiple of 8 sublanes
N_PAD = 1024    # action_dim padded to a multiple of 128 lanes
TN = 512        # output tile along N -> grid of 2 parallel steps


def dqn_kernel(x_ref, w1_ref, b1_ref, w2_ref, b2_ref, w3_ref, b3_ref, o_ref):
    # bf16 operands on the MXU, f32 accumulation; bias add / ReLU in f32 on the VPU.
    x = x_ref[...].astype(jnp.bfloat16)
    h1 = jnp.dot(x, w1_ref[...], preferred_element_type=jnp.float32) + b1_ref[...]
    h1 = jnp.maximum(h1, 0.0).astype(jnp.bfloat16)
    h2 = jnp.dot(h1, w2_ref[...], preferred_element_type=jnp.float32) + b2_ref[...]
    h2 = jnp.maximum(h2, 0.0).astype(jnp.bfloat16)
    out = jnp.dot(h2, w3_ref[...], preferred_element_type=jnp.float32) + b3_ref[...]
    o_ref[...] = out.astype(o_ref.dtype)


def dqn_forward(x, params):
    w1, b1, w2, b2, w3, b3 = params
    B = x.shape[0]
    x_pad = jnp.pad(x, ((0, 0), (0, K_PAD - x.shape[1])))  # zero-pad K: 20 -> 32

    # Advisory cost hint for the XLA scheduler around the custom call.
    flops = 2 * B * (K_PAD * HIDDEN_DIM + HIDDEN_DIM * HIDDEN_DIM + HIDDEN_DIM * N_PAD)
    bytes_accessed = (
        B * K_PAD * 4                     # x (f32)
        + K_PAD * HIDDEN_DIM * 2          # W1 (bf16)
        + HIDDEN_DIM * HIDDEN_DIM * 2     # W2 (bf16)
        + HIDDEN_DIM * N_PAD * 2          # W3 (bf16, dominant)
        + (2 * HIDDEN_DIM + N_PAD) * 4    # biases (f32)
        + B * N_PAD * 4                   # output (f32)
    )

    out = pl.pallas_call(
        dqn_kernel,
        out_shape=jax.ShapeDtypeStruct((B, N_PAD), jnp.float32),
        grid=(N_PAD // TN,),
        in_specs=[
            pl.BlockSpec((B, K_PAD), lambda j: (0, 0)),                # x
            pl.BlockSpec((K_PAD, HIDDEN_DIM), lambda j: (0, 0)),       # W1
            pl.BlockSpec((1, HIDDEN_DIM), lambda j: (0, 0)),           # b1
            pl.BlockSpec((HIDDEN_DIM, HIDDEN_DIM), lambda j: (0, 0)),  # W2
            pl.BlockSpec((1, HIDDEN_DIM), lambda j: (0, 0)),           # b2
            pl.BlockSpec((HIDDEN_DIM, TN), lambda j: (0, j)),          # W3 tile (dominant DMA)
            pl.BlockSpec((1, TN), lambda j: (0, j)),                   # b3 tile
        ],
        out_specs=pl.BlockSpec((B, TN), lambda j: (0, j)),
        compiler_params=pltpu.CompilerParams(
            dimension_semantics=("parallel",)),  # megacore-shardable on v7x
        cost_estimate=pl.CostEstimate(
            flops=flops, transcendentals=0, bytes_accessed=bytes_accessed),
    )(x_pad, w1, b1, w2, b2, w3, b3)
    return out[:, :ACTION_DIM]


def init_params(key):
    # Deterministic init mimicking nn.Linear's U(-1/sqrt(fan_in), 1/sqrt(fan_in)),
    # drawn at the logical shapes, then zero-padded and cast: bf16 weights, f32 biases.
    def linear(key, fan_in, fan_out, pad_in=None, pad_out=None):
        kw, kb = jax.random.split(key)
        bound = 1.0 / jnp.sqrt(jnp.float32(fan_in))
        w = jax.random.uniform(kw, (fan_in, fan_out), jnp.float32, -bound, bound)
        b = jax.random.uniform(kb, (1, fan_out), jnp.float32, -bound, bound)
        if pad_in is not None and pad_in > fan_in:
            w = jnp.pad(w, ((0, pad_in - fan_in), (0, 0)))
        if pad_out is not None and pad_out > fan_out:
            w = jnp.pad(w, ((0, 0), (0, pad_out - fan_out)))
            b = jnp.pad(b, ((0, 0), (0, pad_out - fan_out)))
        return w.astype(jnp.bfloat16), b

    k1, k2, k3 = jax.random.split(key, 3)
    w1, b1 = linear(k1, STATE_DIM, HIDDEN_DIM, pad_in=K_PAD)
    w2, b2 = linear(k2, HIDDEN_DIM, HIDDEN_DIM)
    w3, b3 = linear(k3, HIDDEN_DIM, ACTION_DIM, pad_out=N_PAD)
    return (w1, b1, w2, b2, w3, b3)


def dqn_reference(x, params):
    # Pure-JAX reference using the SAME (bf16, padded) weights upcast to f32; the only
    # difference vs the kernel is bf16 rounding of activations inside the kernel.
    w1, b1, w2, b2, w3, b3 = params
    xp = jnp.pad(x, ((0, 0), (0, K_PAD - x.shape[1])))
    h1 = jnp.maximum(xp @ w1.astype(jnp.float32) + b1, 0.0)
    h2 = jnp.maximum(h1 @ w2.astype(jnp.float32) + b2, 0.0)
    out = h2 @ w3.astype(jnp.float32) + b3
    return out[:, :ACTION_DIM]


if __name__ == "__main__":
    key = jax.random.PRNGKey(0)
    kx, kp = jax.random.split(key)
    batch = 2
    x = jax.random.normal(kx, (batch, STATE_DIM), jnp.float32)
    params = init_params(kp)

    # TODO(synk): for real RL rollouts, amortize the ~300 KB/call weight DMA by batching
    # many states per call or keeping weights VMEM-resident across calls (P10 futures).
    fwd = jax.jit(dqn_forward)
    out = jax.block_until_ready(fwd(x, params))

    ref = dqn_reference(x, params)
    assert out.shape == (batch, ACTION_DIM), out.shape
    # bf16-weight / bf16-activation matmuls with f32 accumulation: loosened tolerance.
    assert jnp.allclose(out, ref, atol=5e-2, rtol=5e-2), "mismatch vs reference"

    print("KERNEL_OK")
</pallas_src>

<mosaic_0001>
module attributes {stable_mosaic.version = 11 : i64} {
  func.func @dqn_kernel(%arg0: i32, %arg1: memref<2x32xf32, #tpu.memory_space<vmem>>, %arg2: memref<32x128xbf16, #tpu.memory_space<vmem>>, %arg3: memref<1x128xf32, #tpu.memory_space<vmem>>, %arg4: memref<128x128xbf16, #tpu.memory_space<vmem>>, %arg5: memref<1x128xf32, #tpu.memory_space<vmem>>, %arg6: memref<128x512xbf16, #tpu.memory_space<vmem>>, %arg7: memref<1x512xf32, #tpu.memory_space<vmem>>, %arg8: memref<2x512xf32, #tpu.memory_space<vmem>>) attributes {dimension_semantics = [#tpu.dimension_semantics<parallel>], iteration_bounds = array<i64: 2>, scalar_prefetch = 0 : i64, scratch_operands = 0 : i64, tpu.core_type = #tpu.core_type<tc>, window_params = [{pipeline_mode = #tpu.pipeline_mode<synchronous>, transform_indices = @transform_0, window_bounds = array<i64: 2, 32>}, {pipeline_mode = #tpu.pipeline_mode<synchronous>, transform_indices = @transform_1, window_bounds = array<i64: 32, 128>}, {pipeline_mode = #tpu.pipeline_mode<synchronous>, transform_indices = @transform_2, window_bounds = array<i64: 1, 128>}, {pipeline_mode = #tpu.pipeline_mode<synchronous>, transform_indices = @transform_3, window_bounds = array<i64: 128, 128>}, {pipeline_mode = #tpu.pipeline_mode<synchronous>, transform_indices = @transform_4, window_bounds = array<i64: 1, 128>}, {transform_indices = @transform_5, window_bounds = array<i64: 128, 512>}, {transform_indices = @transform_6, window_bounds = array<i64: 1, 512>}, {transform_indices = @transform_7, window_bounds = array<i64: 2, 512>}]} {
    %c0 = arith.constant 0 : index
    %c0_0 = arith.constant 0 : index
    %0 = vector.load %arg1[%c0, %c0_0] : memref<2x32xf32, #tpu.memory_space<vmem>>, vector<2x32xf32>
    %1 = arith.truncf %0 : vector<2x32xf32> to vector<2x32xbf16>
    %c0_1 = arith.constant 0 : index
    %c0_2 = arith.constant 0 : index
    %2 = vector.load %arg2[%c0_1, %c0_2] : memref<32x128xbf16, #tpu.memory_space<vmem>>, vector<32x128xbf16>
    %cst = arith.constant dense<0.000000e+00> : vector<2x128xf32>
    %3 = tpu.matmul %1, %2, %cst {dimension_numbers = #tpu.dot_dimension_numbers<[1], [0], [0], [1], [0, 0, 1, 1], [], []>} : vector<2x32xbf16>, vector<32x128xbf16>, vector<2x128xf32> -> vector<2x128xf32>
    %c0_3 = arith.constant 0 : index
    %c0_4 = arith.constant 0 : index
    %4 = vector.load %arg3[%c0_3, %c0_4] : memref<1x128xf32, #tpu.memory_space<vmem>>, vector<1x128xf32>
    %5 = vector.broadcast %4 : vector<1x128xf32> to vector<2x128xf32>
    %6 = arith.addf %3, %5 : vector<2x128xf32>
    %cst_5 = arith.constant 0.000000e+00 : f32
    %7 = vector.broadcast %cst_5 : f32 to vector<2x128xf32>
    %8 = arith.maximumf %6, %7 : vector<2x128xf32>
    %9 = arith.truncf %8 : vector<2x128xf32> to vector<2x128xbf16>
    %c0_6 = arith.constant 0 : index
    %c0_7 = arith.constant 0 : index
    %10 = vector.load %arg4[%c0_6, %c0_7] : memref<128x128xbf16, #tpu.memory_space<vmem>>, vector<128x128xbf16>
    %cst_8 = arith.constant dense<0.000000e+00> : vector<2x128xf32>
    %11 = tpu.matmul %9, %10, %cst_8 {dimension_numbers = #tpu.dot_dimension_numbers<[1], [0], [0], [1], [0, 0, 1, 1], [], []>} : vector<2x128xbf16>, vector<128x128xbf16>, vector<2x128xf32> -> vector<2x128xf32>
    %c0_9 = arith.constant 0 : index
    %c0_10 = arith.constant 0 : index
    %12 = vector.load %arg5[%c0_9, %c0_10] : memref<1x128xf32, #tpu.memory_space<vmem>>, vector<1x128xf32>
    %13 = vector.broadcast %12 : vector<1x128xf32> to vector<2x128xf32>
    %14 = arith.addf %11, %13 : vector<2x128xf32>
    %cst_11 = arith.constant 0.000000e+00 : f32
    %15 = vector.broadcast %cst_11 : f32 to vector<2x128xf32>
    %16 = arith.maximumf %14, %15 : vector<2x128xf32>
    %17 = arith.truncf %16 : vector<2x128xf32> to vector<2x128xbf16>
    %c0_12 = arith.constant 0 : index
    %c0_13 = arith.constant 0 : index
    %18 = vector.load %arg6[%c0_12, %c0_13] : memref<128x512xbf16, #tpu.memory_space<vmem>>, vector<128x512xbf16>
    %cst_14 = arith.constant dense<0.000000e+00> : vector<2x512xf32>
    %19 = tpu.matmul %17, %18, %cst_14 {dimension_numbers = #tpu.dot_dimension_numbers<[1], [0], [0], [1], [0, 0, 1, 1], [], []>} : vector<2x128xbf16>, vector<128x512xbf16>, vector<2x512xf32> -> vector<2x512xf32>
    %c0_15 = arith.constant 0 : index
    %c0_16 = arith.constant 0 : index
    %20 = vector.load %arg7[%c0_15, %c0_16] : memref<1x512xf32, #tpu.memory_space<vmem>>, vector<1x512xf32>
    %21 = vector.broadcast %20 : vector<1x512xf32> to vector<2x512xf32>
    %22 = arith.addf %19, %21 : vector<2x512xf32>
    %c0_17 = arith.constant 0 : index
    %c0_18 = arith.constant 0 : index
    %23 = vector.load %arg8[%c0_17, %c0_18] : memref<2x512xf32, #tpu.memory_space<vmem>>, vector<2x512xf32>
    tpu.vector_store %arg8[%c0_17, %c0_18], %22 {strides = array<i32>} : memref<2x512xf32, #tpu.memory_space<vmem>>, vector<2x512xf32>,
    return
  }
  func.func @transform_0(%arg0: i32) -> (i32, i32) {
    %c0_i32 = arith.constant 0 : i32
    %c0_i32_0 = arith.constant 0 : i32
    %c0_i32_1 = arith.constant 0 : i32
    return %c0_i32, %c0_i32_0 : i32, i32
  }
  func.func @transform_1(%arg0: i32) -> (i32, i32) {
    %c0_i32 = arith.constant 0 : i32
    %c0_i32_0 = arith.constant 0 : i32
    %c0_i32_1 = arith.constant 0 : i32
    return %c0_i32, %c0_i32_0 : i32, i32
  }
  func.func @transform_2(%arg0: i32) -> (i32, i32) {
    %c0_i32 = arith.constant 0 : i32
    %c0_i32_0 = arith.constant 0 : i32
    %c0_i32_1 = arith.constant 0 : i32
    return %c0_i32, %c0_i32_0 : i32, i32
  }
  func.func @transform_3(%arg0: i32) -> (i32, i32) {
    %c0_i32 = arith.constant 0 : i32
    %c0_i32_0 = arith.constant 0 : i32
    %c0_i32_1 = arith.constant 0 : i32
    return %c0_i32, %c0_i32_0 : i32, i32
  }
  func.func @transform_4(%arg0: i32) -> (i32, i32) {
    %c0_i32 = arith.constant 0 : i32
    %c0_i32_0 = arith.constant 0 : i32
    %c0_i32_1 = arith.constant 0 : i32
    return %c0_i32, %c0_i32_0 : i32, i32
  }
  func.func @transform_5(%arg0: i32) -> (i32, i32) {
    %c0_i32 = arith.constant 0 : i32
    %c0_i32_0 = arith.constant 0 : i32
    return %c0_i32, %arg0 : i32, i32
  }
  func.func @transform_6(%arg0: i32) -> (i32, i32) {
    %c0_i32 = arith.constant 0 : i32
    %c0_i32_0 = arith.constant 0 : i32
    return %c0_i32, %arg0 : i32, i32
  }
  func.func @transform_7(%arg0: i32) -> (i32, i32) {
    %c0_i32 = arith.constant 0 : i32
    %c0_i32_0 = arith.constant 0 : i32
    return %c0_i32, %arg0 : i32, i32
  }
}

</mosaic_0001>

<llo_original>
// kernel: dqn_forward.1
$region0: #{dqn_forward.1}
  #allocation0 [shape = 'u32[]', space=smem, size = 0x4, offset = 0x4, fixed_abs, tag = 'smem constant byte address 0x4 - core index']
  #allocation1 [shape = 'u32[72,128]{1,0:T(1,128)}', space=vmem, size = 0x9000, scoped, tag = 'internal scratch']
  %s0 = inlined_call_operand.vmem [shape: f32[2,32], index: 0, kind: input, shape index: {}]
  %s1 = inlined_call_operand.hbm [shape: bf16[32,128], index: 1, kind: input, shape index: {}]
  %s2 = inlined_call_operand.vmem [shape: f32[1,128], index: 2, kind: input, shape index: {}]
  %s3 = inlined_call_operand.hbm [shape: bf16[128,128], index: 3, kind: input, shape index: {}]
  %s4 = inlined_call_operand.vmem [shape: f32[1,128], index: 4, kind: input, shape index: {}]
  %s5 = inlined_call_operand.hbm [shape: bf16[128,1024], index: 5, kind: input, shape index: {}]
  %s6 = inlined_call_operand.vmem [shape: f32[1,1024], index: 6, kind: input, shape index: {}]
  %s7 = inlined_call_operand.hbm [shape: f32[2,1024], index: 7, kind: output, shape index: {}]
  %s8 = sld [smem:[#allocation0]]
  $region73: #{dqn_forward.1} parent=0
    _
  %s10 = ssub.s32 1, %s8
  %s11 = scalar_select 0, %s10, %s8
  $region1: #{dqn_forward.1} parent=0
    #allocation2 [shape = 'u8[8192]{0}', space=vmem, size = 0x2000, scoped, tag = 'input window, operand 1, single buffered']
    #allocation3 [shape = 's32[2]{0}', space=sflag, size = 0x8, scoped, tag = 'scoped memory for dqn_forward.1']
    #allocation4 [shape = 's32[2]{0}', space=sflag, size = 0x8, scoped, tag = 'scoped memory for dqn_forward.1']
    #allocation5 [shape = 'u8[32768]{0}', space=vmem, size = 0x8000, scoped, tag = 'input window, operand 3, single buffered']
    #allocation6 [shape = 's32[1]{0}', space=sflag, size = 0x4, scoped, tag = 'scoped memory for dqn_forward.1']
    #allocation7 [shape = 'u8[262144]{0}', space=vmem, size = 0x40000, scoped, tag = 'input window, operand 5']
    #allocation8 [shape = 'u8[8192]{0}', space=vmem, size = 0x2000, scoped, tag = 'output window, operand 0']
    %12 = vsyncpa [#allocation3], 0
    %13 = vsyncpa [#allocation6], 0
    %14 = vsyncpa [#allocation4], 0
    %s15 = scalar_lea.sflag [#allocation4], 1
    %16 = vsyncpa %s15, 0
    loop: start=0, step=1, limit=4
    $region2: #{dqn_forward.1} parent=1 // loop_pre_header
      _
    $region3: #{dqn_forward.1} parent=1 // loop_header
      %s18 = sphi 0, %s22
      %p19 = scmp.ge.s32.totalorder %s18, 4
      %s26 = sphi 0, %s26
      %s28 = sphi 0, %s26
      %s29 = sphi 0, %s28
      %s43 = sphi 0, %s29
      %s47 = sphi 0, %s47
      %s49 = sphi 0, %s47
      %s50 = sphi 0, %s49
      %s64 = sphi 0, %s50
      %s68 = sphi 0, %s68
      %s70 = sphi 0, %s68
      %s71 = sphi 0, %s70
      %s85 = sphi 0, %s71
      %s89 = sphi 0, %s89
      %s91 = sphi 0, %s89
      %s92 = sphi 0, %s91
      %s106 = sphi 0, %s92
      %s110 = sphi 0, %s110
      %s112 = sphi 0, %s110
      %s113 = sphi 0, %s112
      %s127 = sphi 0, %s113
      %s133 = sphi 0, %s135
      %s136 = sphi 0, %s133
      %s137 = sphi 0, %s136
      %s153 = sphi 0, %s137
      %s159 = sphi 0, %s161
      %s162 = sphi 0, %s159
      %s163 = sphi 0, %s162
      %s179 = sphi 0, %s163
      %s185 = sphi 0, %s187
      %s188 = sphi 0, %s185
      %s189 = sphi 0, %s188
      %s205 = sphi 0, %s189
    $region4: #{dqn_forward.1} parent=1 // loop_header_branch
      %21 = sbr.rel (%p19) target = $region8
    $region5: #{dqn_forward.1} parent=1 // loop_body
      %s23 = ssub.s32 %s18, 1
      %s24 = ssub.s32 %s18, 2
      %s25 = sadd.s32 %s18, 1
      %s27 = sadd.s32 %s26, 1
      %p30 = scmp.eq.s32.totalorder %s18, 1
      %p31 = scmp.ne.s32.totalorder %s26, %s28
      %p32 = scmp.eq.s32.totalorder %s18, 0
      %p33 = por %p31, %p32
      %p34 = scmp.ne.s32.totalorder %s26, %s28
      %p35 = scmp.eq.s32.totalorder %s23, 1
      %p36 = por %p34, %p35
      %p37 = scmp.ne.s32.totalorder %s28, %s29
      %p38 = scmp.eq.s32.totalorder %s23, 0
      %p39 = por %p37, %p38
      %p40 = scmp.ne.s32.totalorder %s28, %s29
      %p41 = scmp.eq.s32.totalorder %s24, 1
      %p42 = por %p40, %p41
      %p44 = scmp.ne.s32.totalorder %s29, %s43
      %p45 = scmp.eq.s32.totalorder %s24, 0
      %p46 = por %p44, %p45
      %s48 = sadd.s32 %s47, 1
      %p51 = scmp.eq.s32.totalorder %s18, 1
      %p52 = scmp.ne.s32.totalorder %s47, %s49
      %p53 = scmp.eq.s32.totalorder %s18, 0
      %p54 = por %p52, %p53
      %p55 = scmp.ne.s32.totalorder %s47, %s49
      %p56 = scmp.eq.s32.totalorder %s23, 1
      %p57 = por %p55, %p56
      %p58 = scmp.ne.s32.totalorder %s49, %s50
      %p59 = scmp.eq.s32.totalorder %s23, 0
      %p60 = por %p58, %p59
      %p61 = scmp.ne.s32.totalorder %s49, %s50
      %p62 = scmp.eq.s32.totalorder %s24, 1
      %p63 = por %p61, %p62
      %p65 = scmp.ne.s32.totalorder %s50, %s64
      %p66 = scmp.eq.s32.totalorder %s24, 0
      %p67 = por %p65, %p66
      %s69 = sadd.s32 %s68, 1
      %p72 = scmp.eq.s32.totalorder %s18, 1
      %p73 = scmp.ne.s32.totalorder %s68, %s70
      %p74 = scmp.eq.s32.totalorder %s18, 0
      %p75 = por %p73, %p74
      %p76 = scmp.ne.s32.totalorder %s68, %s70
      %p77 = scmp.eq.s32.totalorder %s23, 1
      %p78 = por %p76, %p77
      %p79 = scmp.ne.s32.totalorder %s70, %s71
      %p80 = scmp.eq.s32.totalorder %s23, 0
      %p81 = por %p79, %p80
      %p82 = scmp.ne.s32.totalorder %s70, %s71
      %p83 = scmp.eq.s32.totalorder %s24, 1
      %p84 = por %p82, %p83
      %p86 = scmp.ne.s32.totalorder %s71, %s85
      %p87 = scmp.eq.s32.totalorder %s24, 0
      %p88 = por %p86, %p87
      %s90 = sadd.s32 %s89, 1
      %p93 = scmp.eq.s32.totalorder %s18, 1
      %p94 = scmp.ne.s32.totalorder %s89, %s91
      %p95 = scmp.eq.s32.totalorder %s18, 0
      %p96 = por %p94, %p95
      %p97 = scmp.ne.s32.totalorder %s89, %s91
      %p98 = scmp.eq.s32.totalorder %s23, 1
      %p99 = por %p97, %p98
      %p100 = scmp.ne.s32.totalorder %s91, %s92
      %p101 = scmp.eq.s32.totalorder %s23, 0
      %p102 = por %p100, %p101
      %p103 = scmp.ne.s32.totalorder %s91, %s92
      %p104 = scmp.eq.s32.totalorder %s24, 1
      %p105 = por %p103, %p104
      %p107 = scmp.ne.s32.totalorder %s92, %s106
      %p108 = scmp.eq.s32.totalorder %s24, 0
      %p109 = por %p107, %p108
      %s111 = sadd.s32 %s110, 1
      %p114 = scmp.eq.s32.totalorder %s18, 1
      %p115 = scmp.ne.s32.totalorder %s110, %s112
      %p116 = scmp.eq.s32.totalorder %s18, 0
      %p117 = por %p115, %p116
      %p118 = scmp.ne.s32.totalorder %s110, %s112
      %p119 = scmp.eq.s32.totalorder %s23, 1
      %p120 = por %p118, %p119
      %p121 = scmp.ne.s32.totalorder %s112, %s113
      %p122 = scmp.eq.s32.totalorder %s23, 0
      %p123 = por %p121, %p122
      %p124 = scmp.ne.s32.totalorder %s112, %s113
      %p125 = scmp.eq.s32.totalorder %s24, 1
      %p126 = por %p124, %p125
      %p128 = scmp.ne.s32.totalorder %s113, %s127
      %p129 = scmp.eq.s32.totalorder %s24, 0
      %p130 = por %p128, %p129
      %s131 = ssub.s32 %s18, %s25
      %p132 = scmp.eq.s32.totalorder %s131, 0
      %s134 = sadd.s32 %s133, 1
      %s135 = scalar_select %p132, %s133, %s134
      %p138 = pneg %p132
      %p139 = scmp.eq.s32.totalorder %s18, 1
      %p140 = por %p138, %p139
      %p141 = scmp.ne.s32.totalorder %s133, %s136
      %p142 = scmp.eq.s32.totalorder %s18, 0
      %p143 = por %p141, %p142
      %p144 = scmp.ne.s32.totalorder %s133, %s136
      %p145 = scmp.eq.s32.totalorder %s23, 1
      %p146 = por %p144, %p145
      %p147 = scmp.ne.s32.totalorder %s136, %s137
      %p148 = scmp.eq.s32.totalorder %s23, 0
      %p149 = por %p147, %p148
      %p150 = scmp.ne.s32.totalorder %s136, %s137
      %p151 = scmp.eq.s32.totalorder %s24, 1
      %p152 = por %p150, %p151
      %p154 = scmp.ne.s32.totalorder %s137, %s153
      %p155 = scmp.eq.s32.totalorder %s24, 0
      %p156 = por %p154, %p155
      %s157 = ssub.s32 %s18, %s25
      %p158 = scmp.eq.s32.totalorder %s157, 0
      %s160 = sadd.s32 %s159, 1
      %s161 = scalar_select %p158, %s159, %s160
      %p164 = pneg %p158
      %p165 = scmp.eq.s32.totalorder %s18, 1
      %p166 = por %p164, %p165
      %p167 = scmp.ne.s32.totalorder %s159, %s162
      %p168 = scmp.eq.s32.totalorder %s18, 0
      %p169 = por %p167, %p168
      %p170 = scmp.ne.s32.totalorder %s159, %s162
      %p171 = scmp.eq.s32.totalorder %s23, 1
      %p172 = por %p170, %p171
      %p173 = scmp.ne.s32.totalorder %s162, %s163
      %p174 = scmp.eq.s32.totalorder %s23, 0
      %p175 = por %p173, %p174
      %p176 = scmp.ne.s32.totalorder %s162, %s163
      %p177 = scmp.eq.s32.totalorder %s24, 1
      %p178 = por %p176, %p177
      %p180 = scmp.ne.s32.totalorder %s163, %s179
      %p181 = scmp.eq.s32.totalorder %s24, 0
      %p182 = por %p180, %p181
      %s183 = ssub.s32 %s18, %s25
      %p184 = scmp.eq.s32.totalorder %s183, 0
      %s186 = sadd.s32 %s185, 1
      %s187 = scalar_select %p184, %s185, %s186
      %p190 = pneg %p184
      %p191 = scmp.eq.s32.totalorder %s18, 1
      %p192 = por %p190, %p191
      %p193 = scmp.ne.s32.totalorder %s185, %s188
      %p194 = scmp.eq.s32.totalorder %s18, 0
      %p195 = por %p193, %p194
      %p196 = scmp.ne.s32.totalorder %s185, %s188
      %p197 = scmp.eq.s32.totalorder %s23, 1
      %p198 = por %p196, %p197
      %p199 = scmp.ne.s32.totalorder %s188, %s189
      %p200 = scmp.eq.s32.totalorder %s23, 0
      %p201 = por %p199, %p200
      %p202 = scmp.ne.s32.totalorder %s188, %s189
      %p203 = scmp.eq.s32.totalorder %s24, 1
      %p204 = por %p202, %p203
      %p206 = scmp.ne.s32.totalorder %s189, %s205
      %p207 = scmp.eq.s32.totalorder %s24, 0
      %p208 = por %p206, %p207
      %p209 = scmp.le.s32.totalorder 1, %s18
      %p210 = scmp.lt.s32.totalorder %s18, 3
      %p211 = pnand %p209, %p210
      %p212 = pneg %p211
      // Predicated region
      $region9: #{dqn_forward.1} parent=5 // pred_check
        _
      $region10: #{dqn_forward.1} parent=5 // pred_check_branch
        %214 = sbr.rel (%p211) target = $region12
      $region11: #{dqn_forward.1} parent=5 // pred_region
        %s215 = ssub.s32 %s18, 1
        // Predicated region
        $region13: #{dqn_forward.1} parent=11 // pred_check
          %p216 = pneg %p39
        $region14: #{dqn_forward.1} parent=11 // pred_check_branch
          %218 = sbr.rel (%p216) target = $region16
        $region15: #{dqn_forward.1} parent=11 // pred_region
          _
        $region16: #{dqn_forward.1} parent=11 // pred_fallthru
          _
        // Predicated region
        $region17: #{dqn_forward.1} parent=11 // pred_check
          %p219 = pneg %p60
        $region18: #{dqn_forward.1} parent=11 // pred_check_branch
          %221 = sbr.rel (%p219) target = $region20
        $region19: #{dqn_forward.1} parent=11 // pred_region
          %223 = vsyncadd [#allocation3], 0
          %s224 = sshll.u32 %s1, 4
          %s225 = int_to_ptr.hbm [resolvable:$true] %s224
          %s226 = sshll.u32 [#allocation2], 4
          %s227 = int_to_ptr.vmem [resolvable:$true] %s226
          %232 = dma.hbm_to_vmem [thread:$0]  %s225, 256, %s227, [#allocation3], 64, 64, 4
        $region20: #{dqn_forward.1} parent=11 // pred_fallthru
          _
        // Predicated region
        $region21: #{dqn_forward.1} parent=11 // pred_check
          %p233 = pneg %p81
        $region22: #{dqn_forward.1} parent=11 // pred_check_branch
          %235 = sbr.rel (%p233) target = $region24
        $region23: #{dqn_forward.1} parent=11 // pred_region
          _
        $region24: #{dqn_forward.1} parent=11 // pred_fallthru
          _
        // Predicated region
        $region25: #{dqn_forward.1} parent=11 // pred_check
          %p236 = pneg %p102
        $region26: #{dqn_forward.1} parent=11 // pred_check_branch
          %238 = sbr.rel (%p236) target = $region28
        $region27: #{dqn_forward.1} parent=11 // pred_region
          %240 = vsyncadd [#allocation6], 0
          %s241 = sshll.u32 %s3, 4
          %s242 = int_to_ptr.hbm [resolvable:$true] %s241
          %s243 = sshll.u32 [#allocation5], 4
          %s244 = int_to_ptr.vmem [resolvable:$true] %s243
          %249 = dma.hbm_to_vmem [thread:$0]  %s242, 1024, %s244, [#allocation6], 64, 64, 4
        $region28: #{dqn_forward.1} parent=11 // pred_fallthru
          _
        // Predicated region
        $region29: #{dqn_forward.1} parent=11 // pred_check
          %p250 = pneg %p123
        $region30: #{dqn_forward.1} parent=11 // pred_check_branch
          %252 = sbr.rel (%p250) target = $region32
        $region31: #{dqn_forward.1} parent=11 // pred_region
          _
        $region32: #{dqn_forward.1} parent=11 // pred_fallthru
          _
      $region12: #{dqn_forward.1} parent=5 // pred_fallthru
        _
      %p253 = scmp.lt.s32.totalorder %s18, 2
      // Predicated region
      $region33: #{dqn_forward.1} parent=5 // pred_check
        %p254 = pneg %p253
      $region34: #{dqn_forward.1} parent=5 // pred_check_branch
        %256 = sbr.rel (%p254) target = $region36
      $region35: #{dqn_forward.1} parent=5 // pred_region
        // Predicated region
        $region37: #{dqn_forward.1} parent=35 // pred_check
          %p257 = pneg %p143
        $region38: #{dqn_forward.1} parent=35 // pred_check_branch
          %259 = sbr.rel (%p257) target = $region40
        $region39: #{dqn_forward.1} parent=35 // pred_region
          %s260 = sand.u32 %s18, 1
          %s261 = scalar_lea.sflag [#allocation3], %s260
          %s262 = sand.u32 %s133, 1
          %s263 = smul.addr %s262, 256
          %s264 = scalar_lea.vmem [#allocation7], %s263
          %s265 = smul.u32 4, %s18
          %267 = vsyncadd %s261, 0
          %s268 = smul.addr %s265, 4
          %s269 = scalar_lea.hbm %s5, %s268
          %s270 = sshll.u32 %s269, 4
          %s271 = int_to_ptr.hbm [resolvable:$true] %s270
          %s272 = sshll.u32 %s264, 4
          %s273 = int_to_ptr.vmem [resolvable:$true] %s272
          %278 = dma.hbm_to_vmem [thread:$0]  %s271, 4096, %s273, %s261, 512, 256, 16
        $region40: #{dqn_forward.1} parent=35 // pred_fallthru
          _
        // Predicated region
        $region41: #{dqn_forward.1} parent=35 // pred_check
          %p279 = pneg %p169
        $region42: #{dqn_forward.1} parent=35 // pred_check_branch
          %281 = sbr.rel (%p279) target = $region44
        $region43: #{dqn_forward.1} parent=35 // pred_region
          %s282 = smul.u32 4, %s18
          %p283 = scmp.lt.s32.totalorder %s282, 7
          %s284 = scalar_select %p283, %s282, 7
          %s285 = scalar_lea.vmem %s6, %s284
          %s286 = smul.u32 4, %s18
        $region44: #{dqn_forward.1} parent=35 // pred_fallthru
          _
      $region36: #{dqn_forward.1} parent=5 // pred_fallthru
        _
      %p287 = scmp.le.s32.totalorder 1, %s18
      %p288 = scmp.lt.s32.totalorder %s18, 3
      %p289 = pnand %p287, %p288
      %p290 = pneg %p289
      // Predicated region
      $region45: #{dqn_forward.1} parent=5 // pred_check
        _
      $region46: #{dqn_forward.1} parent=5 // pred_check_branch
        %292 = sbr.rel (%p289) target = $region48
      $region47: #{dqn_forward.1} parent=5 // pred_region
        %s293 = ssub.s32 %s18, 1
        // Predicated region
        $region49: #{dqn_forward.1} parent=47 // pred_check
          %p294 = pneg %p60
        $region50: #{dqn_forward.1} parent=47 // pred_check_branch
          %296 = sbr.rel (%p294) target = $region52
        $region51: #{dqn_forward.1} parent=47 // pred_region
          %298 = dma.done [#allocation3], 256
        $region52: #{dqn_forward.1} parent=47 // pred_fallthru
          _
        // Predicated region
        $region53: #{dqn_forward.1} parent=47 // pred_check
          %p299 = pneg %p102
        $region54: #{dqn_forward.1} parent=47 // pred_check_branch
          %301 = sbr.rel (%p299) target = $region56
        $region55: #{dqn_forward.1} parent=47 // pred_region
          %303 = dma.done [#allocation6], 1024
        $region56: #{dqn_forward.1} parent=47 // pred_fallthru
          _
        %s304 = sand.u32 %s23, 1
        %s305 = scalar_lea.sflag [#allocation3], %s304
        %s306 = sand.u32 %s136, 1
        %s307 = smul.addr %s306, 256
        %s308 = scalar_lea.vmem [#allocation7], %s307
        // Predicated region
        $region57: #{dqn_forward.1} parent=47 // pred_check
          %p309 = pneg %p149
        $region58: #{dqn_forward.1} parent=47 // pred_check_branch
          %311 = sbr.rel (%p309) target = $region60
        $region59: #{dqn_forward.1} parent=47 // pred_region
          %313 = dma.done %s305, 4096
        $region60: #{dqn_forward.1} parent=47 // pred_fallthru
          _
        %p314 = pneg %p39
        %p315 = pneg %p36
        %p316 = pneg %p60
        %p317 = pneg %p57
        %p318 = pneg %p81
        %p319 = pneg %p78
        %p320 = pneg %p102
        %p321 = pneg %p99
        %p322 = pneg %p123
        %p323 = pneg %p120
        %s324 = sand.u32 %s23, 1
        %s325 = scalar_lea.sflag [#allocation3], %s324
        %s326 = sand.u32 %s136, 1
        %s327 = smul.addr %s326, 256
        %s328 = scalar_lea.vmem [#allocation7], %s327
        %p329 = pneg %p149
        %p330 = pneg %p146
        %s331 = smul.u32 4, %s23
        %p332 = scmp.lt.s32.totalorder %s331, 7
        %s333 = scalar_select %p332, %s331, 7
        %s334 = scalar_lea.vmem %s6, %s333
        %p335 = pneg %p175
        %p336 = pneg %p172
        %p337 = pneg %p201
        %p338 = pneg %p198
        %s339 = sand.u32 %s188, 1
        %s340 = scalar_lea.sflag [#allocation4], %s339
        %s341 = sand.u32 %s188, 1
        %s342 = smul.addr %s341, 8
        %s343 = scalar_lea.vmem [#allocation8], %s342
        %s344 = smul.u32 4, %s23
        %s345 = smul.u32 4, %s23
        %p346 = scmp.lt.s32.totalorder %s345, 7
        %s347 = scalar_select %p346, %s345, 7
        %s348 = scalar_lea.vmem %s6, %s347
        %s349 = smul.u32 4, %s23
        %s350 = smul.u32 4, %s23
        %v352 = vld [vmem:[%s0] sm:$0x3]
        %v353 = vpack.c.bf16 %v352, %v352
        %v354 = vld [vmem:[#allocation2] sm:$0xf]
        %v355 = vld [vmem:[#allocation2 + $0x4] sm:$0xf]
        %v356 = vld [vmem:[#allocation2 + $0x8] sm:$0xf]
        %v357 = vld [vmem:[#allocation2 + $0xc] sm:$0xf]
        %v358 = vld [vmem:[%s2] sm:$0x1]
        %v360 = vperm.slane %v358, 0
        %v366 = vunpack.c.l.b16 %v354
        %v367 = vunpack.c.l.b16 %v355
        %v368 = vunpack.c.l.b16 %v356
        %v369 = vunpack.c.l.b16 %v357
        %v370 = vpack.c.b16 %v367, %v366
        %v371 = vpack.c.b16 %v369, %v368
        %vm374 = vcmask 261120
        %v376 = vsel %vm374, %v353, 0
        %378 = vmatpush.bf16.msra.mxu0 0
        %379 = vmatpush.bf16.msra.mxu0 0
        %380 = vmatpush.bf16.msra.mxu0 0
        %381 = vmatpush.bf16.msra.mxu0 0
        %382 = vmatpush.bf16.msra.mxu0 0
        %383 = vmatpush.bf16.msra.mxu0 0
        %384 = vmatpush.bf16.msra.mxu0 %v371
        %385 = vmatpush.bf16.msra.mxu0 %v370
        %386 = vmatmul.bf16.gmra.mxu0 %v376
        %v387 = vpop.f32.mrf.mxu0
        %v388 = vadd.f32 %v360, %v387
        %v389 = vpop.f32.mrf.mxu0
        %390 = vdwg.mxu0
        %v391 = vmax.f32 %v388, 0.0
        %v392 = vpack.c.bf16 %v391, %v391
        %v393 = vld [vmem:[#allocation5] sm:$0xf]
        %v394 = vld [vmem:[#allocation5 + $0x4] sm:$0xf]
        %v395 = vld [vmem:[#allocation5 + $0x8] sm:$0xf]
        %v396 = vld [vmem:[#allocation5 + $0xc] sm:$0xf]
        %v397 = vld [vmem:[#allocation5 + $0x10] sm:$0xf]
        %v398 = vld [vmem:[#allocation5 + $0x14] sm:$0xf]
        %v399 = vld [vmem:[#allocation5 + $0x18] sm:$0xf]
        %v400 = vld [vmem:[#allocation5 + $0x1c] sm:$0xf]
        %v401 = vld [vmem:[#allocation5 + $0x20] sm:$0xf]
        %v402 = vld [vmem:[#allocation5 + $0x24] sm:$0xf]
        %v403 = vld [vmem:[#allocation5 + $0x28] sm:$0xf]
        %v404 = vld [vmem:[#allocation5 + $0x2c] sm:$0xf]
        %v405 = vld [vmem:[#allocation5 + $0x30] sm:$0xf]
        %v406 = vld [vmem:[#allocation5 + $0x34] sm:$0xf]
        %v407 = vld [vmem:[#allocation5 + $0x38] sm:$0xf]
        %v408 = vld [vmem:[#allocation5 + $0x3c] sm:$0xf]
        %v409 = vld [vmem:[%s4] sm:$0x1]
        %v411 = vperm.slane %v409, 0
        %v429 = vunpack.c.l.b16 %v393
        %v430 = vunpack.c.l.b16 %v394
        %v431 = vunpack.c.l.b16 %v395
        %v432 = vunpack.c.l.b16 %v396
        %v433 = vunpack.c.l.b16 %v397
        %v434 = vunpack.c.l.b16 %v398
        %v435 = vunpack.c.l.b16 %v399
        %v436 = vunpack.c.l.b16 %v400
        %v437 = vunpack.c.l.b16 %v401
        %v438 = vunpack.c.l.b16 %v402
        %v439 = vunpack.c.l.b16 %v403
        %v440 = vunpack.c.l.b16 %v404
        %v441 = vunpack.c.l.b16 %v405
        %v442 = vunpack.c.l.b16 %v406
        %v443 = vunpack.c.l.b16 %v407
        %v444 = vunpack.c.l.b16 %v408
        %v445 = vpack.c.b16 %v430, %v429
        %v446 = vpack.c.b16 %v432, %v431
        %v447 = vpack.c.b16 %v434, %v433
        %v448 = vpack.c.b16 %v436, %v435
        %v449 = vpack.c.b16 %v438, %v437
        %v450 = vpack.c.b16 %v440, %v439
        %v451 = vpack.c.b16 %v442, %v441
        %v452 = vpack.c.b16 %v444, %v443
        %461 = vmatpush.bf16.msra.mxu0 %v452
        %462 = vmatpush.bf16.msra.mxu0 %v451
        %463 = vmatpush.bf16.msra.mxu0 %v450
        %464 = vmatpush.bf16.msra.mxu0 %v449
        %465 = vmatpush.bf16.msra.mxu0 %v448
        %466 = vmatpush.bf16.msra.mxu0 %v447
        %467 = vmatpush.bf16.msra.mxu0 %v446
        %468 = vmatpush.bf16.msra.mxu0 %v445
        %469 = vmatmul.bf16.gmra.mxu0 %v392
        %v470 = vpop.f32.mrf.mxu0
        %v471 = vadd.f32 %v411, %v470
        %v472 = vpop.f32.mrf.mxu0
        %473 = vdwg.mxu0
        %v474 = vmax.f32 %v471, 0.0
        %v475 = vpack.c.bf16 %v474, %v474
        %v476 = vld [vmem:[%s308] sm:$0xff]
        %v477 = vld [vmem:[%s308 + $0x8] sm:$0xff]
        %v478 = vld [vmem:[%s308 + $0x10] sm:$0xff]
        %v479 = vld [vmem:[%s308 + $0x18] sm:$0xff]
        %v480 = vld [vmem:[%s308 + $0x20] sm:$0xff]
        %v481 = vld [vmem:[%s308 + $0x28] sm:$0xff]
        %v482 = vld [vmem:[%s308 + $0x30] sm:$0xff]
        %v483 = vld [vmem:[%s308 + $0x38] sm:$0xff]
        %v484 = vld [vmem:[%s308 + $0x40] sm:$0xff]
        %v485 = vld [vmem:[%s308 + $0x48] sm:$0xff]
        %v486 = vld [vmem:[%s308 + $0x50] sm:$0xff]
        %v487 = vld [vmem:[%s308 + $0x58] sm:$0xff]
        %v488 = vld [vmem:[%s308 + $0x60] sm:$0xff]
        %v489 = vld [vmem:[%s308 + $0x68] sm:$0xff]
        %v490 = vld [vmem:[%s308 + $0x70] sm:$0xff]
        %v491 = vld [vmem:[%s308 + $0x78] sm:$0xff]
        %v492 = vld [vmem:[%s308 + $0x80] sm:$0xff]
        %v493 = vld [vmem:[%s308 + $0x88] sm:$0xff]
        %v494 = vld [vmem:[%s308 + $0x90] sm:$0xff]
        %v495 = vld [vmem:[%s308 + $0x98] sm:$0xff]
        %v496 = vld [vmem:[%s308 + $0xa0] sm:$0xff]
        %v497 = vld [vmem:[%s308 + $0xa8] sm:$0xff]
        %v498 = vld [vmem:[%s308 + $0xb0] sm:$0xff]
        %v499 = vld [vmem:[%s308 + $0xb8] sm:$0xff]
        %v500 = vld [vmem:[%s308 + $0xc0] sm:$0xff]
        %v501 = vld [vmem:[%s308 + $0xc8] sm:$0xff]
        %v502 = vld [vmem:[%s308 + $0xd0] sm:$0xff]
        %v503 = vld [vmem:[%s308 + $0xd8] sm:$0xff]
        %v504 = vld [vmem:[%s308 + $0xe0] sm:$0xff]
        %v505 = vld [vmem:[%s308 + $0xe8] sm:$0xff]
        %v506 = vld [vmem:[%s308 + $0xf0] sm:$0xff]
        %v507 = vld [vmem:[%s308 + $0xf8] sm:$0xff]
        %v508 = vld [vmem:[%s348] sm:$0xf]
        %v510 = vperm.slane %v508, 0
        %v511 = vperm.slane %v508, 1
        %v512 = vperm.slane %v508, 2
        %v513 = vperm.slane %v508, 3
        %v550 = vunpack.c.l.b16 %v476
        %v551 = vunpack.c.h.b16 %v476
        %v552 = vunpack.c.l.b16 %v477
        %v553 = vunpack.c.h.b16 %v477
        %v554 = vunpack.c.l.b16 %v478
        %v555 = vunpack.c.h.b16 %v478
        %v556 = vunpack.c.l.b16 %v479
        %v557 = vunpack.c.h.b16 %v479
        %v558 = vunpack.c.l.b16 %v480
        %v559 = vunpack.c.h.b16 %v480
        %v560 = vunpack.c.l.b16 %v481
        %v561 = vunpack.c.h.b16 %v481
        %v562 = vunpack.c.l.b16 %v482
        %v563 = vunpack.c.h.b16 %v482
        %v564 = vunpack.c.l.b16 %v483
        %v565 = vunpack.c.h.b16 %v483
        %v566 = vunpack.c.l.b16 %v484
        %v567 = vunpack.c.h.b16 %v484
        %v568 = vunpack.c.l.b16 %v485
        %v569 = vunpack.c.h.b16 %v485
        %v570 = vunpack.c.l.b16 %v486
        %v571 = vunpack.c.h.b16 %v486
        %v572 = vunpack.c.l.b16 %v487
        %v573 = vunpack.c.h.b16 %v487
        %v574 = vunpack.c.l.b16 %v488
        %v575 = vunpack.c.h.b16 %v488
        %v576 = vunpack.c.l.b16 %v489
        %v577 = vunpack.c.h.b16 %v489
        %v578 = vunpack.c.l.b16 %v490
        %v579 = vunpack.c.h.b16 %v490
        %v580 = vunpack.c.l.b16 %v491
        %v581 = vunpack.c.h.b16 %v491
        %v582 = vunpack.c.l.b16 %v492
        %v583 = vunpack.c.h.b16 %v492
        %v584 = vunpack.c.l.b16 %v493
        %v585 = vunpack.c.h.b16 %v493
        %v586 = vunpack.c.l.b16 %v494
        %v587 = vunpack.c.h.b16 %v494
        %v588 = vunpack.c.l.b16 %v495
        %v589 = vunpack.c.h.b16 %v495
        %v590 = vunpack.c.l.b16 %v496
        %v591 = vunpack.c.h.b16 %v496
        %v592 = vunpack.c.l.b16 %v497
        %v593 = vunpack.c.h.b16 %v497
        %v594 = vunpack.c.l.b16 %v498
        %v595 = vunpack.c.h.b16 %v498
        %v596 = vunpack.c.l.b16 %v499
        %v597 = vunpack.c.h.b16 %v499
        %v598 = vunpack.c.l.b16 %v500
        %v599 = vunpack.c.h.b16 %v500
        %v600 = vunpack.c.l.b16 %v501
        %v601 = vunpack.c.h.b16 %v501
        %v602 = vunpack.c.l.b16 %v502
        %v603 = vunpack.c.h.b16 %v502
        %v604 = vunpack.c.l.b16 %v503
        %v605 = vunpack.c.h.b16 %v503
        %v606 = vunpack.c.l.b16 %v504
        %v607 = vunpack.c.h.b16 %v504
        %v608 = vunpack.c.l.b16 %v505
        %v609 = vunpack.c.h.b16 %v505
        %v610 = vunpack.c.l.b16 %v506
        %v611 = vunpack.c.h.b16 %v506
        %v612 = vunpack.c.l.b16 %v507
        %v613 = vunpack.c.h.b16 %v507
        %v614 = vpack.c.b16 %v554, %v550
        %v615 = vpack.c.b16 %v555, %v551
        %v616 = vpack.c.b16 %v556, %v552
        %v617 = vpack.c.b16 %v557, %v553
        %v618 = vpack.c.b16 %v562, %v558
        %v619 = vpack.c.b16 %v563, %v559
        %v620 = vpack.c.b16 %v564, %v560
        %v621 = vpack.c.b16 %v565, %v561
        %v622 = vpack.c.b16 %v570, %v566
        %v623 = vpack.c.b16 %v571, %v567
        %v624 = vpack.c.b16 %v572, %v568
        %v625 = vpack.c.b16 %v573, %v569
        %v626 = vpack.c.b16 %v578, %v574
        %v627 = vpack.c.b16 %v579, %v575
        %v628 = vpack.c.b16 %v580, %v576
        %v629 = vpack.c.b16 %v581, %v577
        %v630 = vpack.c.b16 %v586, %v582
        %v631 = vpack.c.b16 %v587, %v583
        %v632 = vpack.c.b16 %v588, %v584
        %v633 = vpack.c.b16 %v589, %v585
        %v634 = vpack.c.b16 %v594, %v590
        %v635 = vpack.c.b16 %v595, %v591
        %v636 = vpack.c.b16 %v596, %v592
        %v637 = vpack.c.b16 %v597, %v593
        %v638 = vpack.c.b16 %v602, %v598
        %v639 = vpack.c.b16 %v603, %v599
        %v640 = vpack.c.b16 %v604, %v600
        %v641 = vpack.c.b16 %v605, %v601
        %v642 = vpack.c.b16 %v610, %v606
        %v643 = vpack.c.b16 %v611, %v607
        %v644 = vpack.c.b16 %v612, %v608
        %v645 = vpack.c.b16 %v613, %v609
        %678 = vmatpush.bf16.msra.mxu0 %v642
        %679 = vmatpush.bf16.msra.mxu0 %v638
        %680 = vmatpush.bf16.msra.mxu0 %v634
        %681 = vmatpush.bf16.msra.mxu0 %v630
        %682 = vmatpush.bf16.msra.mxu0 %v626
        %683 = vmatpush.bf16.msra.mxu0 %v622
        %684 = vmatpush.bf16.msra.mxu0 %v618
        %685 = vmatpush.bf16.msra.mxu0 %v614
        %686 = vmatmul.bf16.gmra.mxu0 %v475
        %v687 = vpop.f32.mrf.mxu0
        %v688 = vadd.f32 %v510, %v687
        %v689 = vpop.f32.mrf.mxu0
        %690 = vdwg.mxu0
        %691 = vmatpush.bf16.msra.mxu0 %v643
        %692 = vmatpush.bf16.msra.mxu0 %v639
        %693 = vmatpush.bf16.msra.mxu0 %v635
        %694 = vmatpush.bf16.msra.mxu0 %v631
        %695 = vmatpush.bf16.msra.mxu0 %v627
        %696 = vmatpush.bf16.msra.mxu0 %v623
        %697 = vmatpush.bf16.msra.mxu0 %v619
        %698 = vmatpush.bf16.msra.mxu0 %v615
        %699 = vmatmul.bf16.gmra.mxu0 %v475
        %v700 = vpop.f32.mrf.mxu0
        %v701 = vadd.f32 %v511, %v700
        %v702 = vpop.f32.mrf.mxu0
        %703 = vdwg.mxu0
        %704 = vmatpush.bf16.msra.mxu0 %v644
        %705 = vmatpush.bf16.msra.mxu0 %v640
        %706 = vmatpush.bf16.msra.mxu0 %v636
        %707 = vmatpush.bf16.msra.mxu0 %v632
        %708 = vmatpush.bf16.msra.mxu0 %v628
        %709 = vmatpush.bf16.msra.mxu0 %v624
        %710 = vmatpush.bf16.msra.mxu0 %v620
        %711 = vmatpush.bf16.msra.mxu0 %v616
        %712 = vmatmul.bf16.gmra.mxu0 %v475
        %v713 = vpop.f32.mrf.mxu0
        %v714 = vadd.f32 %v512, %v713
        %v715 = vpop.f32.mrf.mxu0
        %716 = vdwg.mxu0
        %717 = vmatpush.bf16.msra.mxu0 %v645
        %718 = vmatpush.bf16.msra.mxu0 %v641
        %719 = vmatpush.bf16.msra.mxu0 %v637
        %720 = vmatpush.bf16.msra.mxu0 %v633
        %721 = vmatpush.bf16.msra.mxu0 %v629
        %722 = vmatpush.bf16.msra.mxu0 %v625
        %723 = vmatpush.bf16.msra.mxu0 %v621
        %724 = vmatpush.bf16.msra.mxu0 %v617
        %725 = vmatmul.bf16.gmra.mxu0 %v475
        %v726 = vpop.f32.mrf.mxu0
        %v727 = vadd.f32 %v513, %v726
        %v728 = vpop.f32.mrf.mxu0
        %729 = vdwg.mxu0
        %v734 = vrot.slane %v701, 6
        %v735 = vrot.slane %v714, 4
        %v736 = vrot.slane %v727, 2
        %vm737 = vcmask 1041408
        %v738 = vsel %vm737, %v688, %v734
        %vm739 = vcmask 1045508
        %v740 = vsel %vm739, %v735, %v736
        %vm741 = vcmask 1043456
        %v742 = vsel %vm741, %v738, %v740
        %744 = vst [vmem:[%s343] sm:$0xff] %v742
        %s745 = sand.u32 %s188, 1
        %s746 = scalar_lea.sflag [#allocation4], %s745
        %s747 = sand.u32 %s188, 1
        %s748 = smul.addr %s747, 8
        %s749 = scalar_lea.vmem [#allocation8], %s748
        // Predicated region
        $region61: #{dqn_forward.1} parent=47 // pred_check
          %p750 = pneg %p198
        $region62: #{dqn_forward.1} parent=47 // pred_check_branch
          %752 = sbr.rel (%p750) target = $region64
        $region63: #{dqn_forward.1} parent=47 // pred_region
          %s753 = smul.u32 4, %s23
          %755 = vsyncadd %s746, 0
          %s756 = smul.addr %s753, 2
          %s757 = scalar_lea.hbm %s7, %s756
          %s759 = sshll.u32 %s749, 4
          %s760 = int_to_ptr.vmem [resolvable:$true] %s759
          %s761 = sshll.u32 %s757, 4
          %s762 = int_to_ptr.hbm [resolvable:$true] %s761
          %764 = dma.vmem_to_hbm [thread:$0]  %s760, 128, %s762, %s746
        $region64: #{dqn_forward.1} parent=47 // pred_fallthru
          _
      $region48: #{dqn_forward.1} parent=5 // pred_fallthru
        _
      %p765 = scmp.le.s32.totalorder 2, %s18
      // Predicated region
      $region65: #{dqn_forward.1} parent=5 // pred_check
        %p766 = pneg %p765
      $region66: #{dqn_forward.1} parent=5 // pred_check_branch
        %768 = sbr.rel (%p766) target = $region68
      $region67: #{dqn_forward.1} parent=5 // pred_region
        %s769 = ssub.s32 %s18, 2
        // Predicated region
        $region69: #{dqn_forward.1} parent=67 // pred_check
          %p770 = pneg %p204
        $region70: #{dqn_forward.1} parent=67 // pred_check_branch
          %772 = sbr.rel (%p770) target = $region72
        $region71: #{dqn_forward.1} parent=67 // pred_region
          %s773 = sand.u32 %s189, 1
          %s774 = scalar_lea.sflag [#allocation4], %s773
          %s775 = sand.u32 %s189, 1
          %s776 = smul.addr %s775, 8
          %s777 = scalar_lea.vmem [#allocation8], %s776
          %779 = dma.done %s774, 128
        $region72: #{dqn_forward.1} parent=67 // pred_fallthru
          _
      $region68: #{dqn_forward.1} parent=5 // pred_fallthru
        _
    $region6: #{dqn_forward.1} parent=1 // loop_footer
      %s22 = sadd.s32 1, %s18
    $region7: #{dqn_forward.1} parent=1 // loop_footer_branch
      %17 = sbr.rel target = $region3
    $region8: #{dqn_forward.1} parent=1 // loop_exit
      _
    %780 = vsyncpa [#allocation3], 1
    %s781 = scalar_lea.sflag [#allocation3], 1
    %782 = vsyncpa %s781, 1
    %783 = vsyncpa [#allocation6], 1
    %784 = vsyncpa [#allocation4], 1
    %s785 = scalar_lea.sflag [#allocation4], 1
    %786 = vsyncpa %s785, 1

</llo_original>
